<compile_context>
chip_gen: v7x
topology: tpu7x:2x2x1
jax: 0.10.0
libtpu: 0.0.40
codegen_flags: <defaults>
</compile_context>

<pallas_src>
import jax
import jax.numpy as jnp
from jax import lax
from jax.experimental import pallas as pl
from jax.experimental.pallas import tpu as pltpu

_LANES = 128


def _round_up(x: int, m: int) -> int:
    return ((x + m - 1) // m) * m


def _make_wmse_kernel(threshold: float, weight_factor: float, rows: int,
                      row_tile: int, inner_rows: int, steps_per_split: int):
    # NOTE: only Python scalars are closed over (no jnp arrays), so the kernel
    # does not capture traced constants.
    thr = float(threshold)
    wf = float(weight_factor)
    n_inner = row_tile // inner_rows
    sub_groups = inner_rows // 8

    def wmse_kernel(pred_ref, tgt_ref, out_ref, acc_ref):
        c = pl.program_id(0)   # parallel split (TensorCore shard on v7x)
        i = pl.program_id(1)   # reduction step within the split

        @pl.when(i == 0)
        def _():
            acc_ref[...] = jnp.zeros_like(acc_ref)

        # Intended (unclamped) block index; the index_map clamps the DMA to a
        # valid block, and the mask below zeroes any rows past `rows`.
        blk = c * steps_per_split + i
        base_row = blk * row_tile

        # Hoisted loop invariants (iota / broadcasts are not CSE'd in loops).
        local_row = lax.broadcasted_iota(jnp.int32, (inner_rows, _LANES), 0)

        def body(r, acc):
            r0 = pl.multiple_of(r * inner_rows, inner_rows)
            p = pred_ref[pl.ds(r0, inner_rows), :].astype(jnp.float32)
            t = tgt_ref[pl.ds(r0, inner_rows), :].astype(jnp.float32)
            d = p - t
            v = jnp.where(t < thr, wf, 1.0) * (d * d)
            # Mask rows past the real extent (partial tail / fully-OOB block).
            grow = base_row + r * inner_rows + local_row
            v = jnp.where(grow < rows, v, 0.0)
            # Fold (inner_rows,128) -> (8,128) with pure elementwise adds.
            return acc + v.reshape(sub_groups, 8, _LANES).sum(axis=0)

        part = lax.fori_loop(0, n_inner, body,
                             jnp.zeros((8, _LANES), jnp.float32))
        acc_ref[...] += part

        @pl.when(i == pl.num_programs(1) - 1)
        def _():
            # Single cross-sublane reduce in the epilogue; lane-dense store.
            out_ref[...] = jnp.sum(acc_ref[...], axis=0, keepdims=True)

    return wmse_kernel


def weighted_mse_loss(pred, target, threshold=1.0, weight_factor=2.0,
                      row_tile=2048, num_splits=2):
    """Scalar weighted-MSE loss over arbitrarily shaped (matching) pred/target."""
    assert pred.shape == target.shape
    total = pred.size

    # Flatten to a lane-dense (rows, 128) slab in the NATIVE dtype (no wrapper
    # upcast). Pad only the final partial lane-row (<=127 elems) with zeros in
    # both tensors, which contributes exactly 0 to the weighted sum.
    p_flat = jnp.ravel(pred)
    t_flat = jnp.ravel(target)
    pad = (-total) % _LANES
    if pad:
        p_flat = jnp.pad(p_flat, (0, pad))
        t_flat = jnp.pad(t_flat, (0, pad))
    rows = (total + pad) // _LANES
    p2 = p_flat.reshape(rows, _LANES)
    t2 = t_flat.reshape(rows, _LANES)

    # Sublane granularity (8 for f32, 16 for bf16, ...).
    sub = 8 * max(1, 4 // jnp.dtype(pred.dtype).itemsize)

    # Effective block rows: as big as requested, but never (much) bigger than
    # the array; always a multiple of the sublane granularity.
    row_tile_eff = max(sub, _round_up(min(row_tile, _round_up(rows, sub)), sub))

    # Inner vreg-friendly chunk: largest multiple of `sub` (<=128) dividing the
    # block, so per-iteration register pressure stays bounded for big blocks.
    inner = sub
    for cand in range(min(128, row_tile_eff), sub - 1, -sub):
        if row_tile_eff % cand == 0:
            inner = cand
            break

    total_steps = pl.cdiv(rows, row_tile_eff)
    nsplit = num_splits if total_steps >= num_splits else 1
    sps = pl.cdiv(total_steps, nsplit)

    def in_map(c, i):
        # Clamp the DMA to a valid block; the kernel masks using the
        # unclamped index, so duplicated reads contribute nothing.
        return (jnp.minimum(c * sps + i, total_steps - 1), 0)

    kernel = _make_wmse_kernel(threshold, weight_factor, rows,
                               row_tile_eff, inner, sps)

    partials = pl.pallas_call(
        kernel,
        out_shape=jax.ShapeDtypeStruct((nsplit, _LANES), jnp.float32),
        grid_spec=pltpu.PrefetchScalarGridSpec(
            num_scalar_prefetch=0,
            grid=(nsplit, sps),
            in_specs=[
                pl.BlockSpec((row_tile_eff, _LANES), in_map),
                pl.BlockSpec((row_tile_eff, _LANES), in_map),
            ],
            out_specs=pl.BlockSpec((1, _LANES), lambda c, i: (c, 0)),
            scratch_shapes=[pltpu.VMEM((8, _LANES), jnp.float32)],
        ),
        compiler_params=pltpu.CompilerParams(
            dimension_semantics=("parallel", "arbitrary"),
            vmem_limit_bytes=32 << 20,
        ),
    )(p2, t2)

    # Tiny (nsplit, 128) lane reduce + mean scale in plain XLA.
    return jnp.sum(partials) / jnp.float32(total)


def weighted_mse_loss_ref(pred, target, threshold=1.0, weight_factor=2.0):
    pred = pred.astype(jnp.float32)
    target = target.astype(jnp.float32)
    mse = (pred - target) ** 2
    w = jnp.where(target < threshold, weight_factor, 1.0)
    return jnp.mean(w * mse)


if __name__ == "__main__":
    key = jax.random.PRNGKey(0)
    k1, k2 = jax.random.split(key)
    # Small regression-style inputs (e.g. DON predictions), NCHW-ish example.
    shape = (2, 4, 16, 16)
    pred = jax.random.normal(k1, shape, dtype=jnp.float32) + 1.0
    target = jax.random.normal(k2, shape, dtype=jnp.float32) + 1.0

    loss = weighted_mse_loss(pred, target, threshold=1.0, weight_factor=2.0)
    loss = jax.block_until_ready(loss)

    ref = weighted_mse_loss_ref(pred, target, threshold=1.0, weight_factor=2.0)
    assert jnp.allclose(loss, ref, rtol=1e-5, atol=1e-5), (loss, ref)
    print("KERNEL_OK")
</pallas_src>

<mosaic_0001>
module attributes {stable_mosaic.version = 11 : i64} {
  func.func @wmse_kernel(%arg0: i32, %arg1: i32, %arg2: memref<16x128xf32, #tpu.memory_space<vmem>>, %arg3: memref<16x128xf32, #tpu.memory_space<vmem>>, %arg4: memref<1x128xf32, #tpu.memory_space<vmem>>, %arg5: memref<8x128xf32, #tpu.memory_space<vmem>>) attributes {dimension_semantics = [#tpu.dimension_semantics<parallel>, #tpu.dimension_semantics<arbitrary>], iteration_bounds = array<i64: 1, 1>, scalar_prefetch = 0 : i64, scratch_operands = 1 : i64, tpu.core_type = #tpu.core_type<tc>, window_params = [{transform_indices = @transform_0, window_bounds = array<i64: 16, 128>}, {transform_indices = @transform_1, window_bounds = array<i64: 16, 128>}, {transform_indices = @transform_2, window_bounds = array<i64: 1, 128>}]} {
    %c0_i32 = arith.constant 0 : i32
    %0 = arith.cmpi eq, %arg1, %c0_i32 : i32
    %1 = arith.extui %0 : i1 to i32
    %c0_i32_0 = arith.constant 0 : i32
    %2 = arith.cmpi ne, %1, %c0_i32_0 : i32
    scf.if %2 {
      %cst_18 = arith.constant 0.000000e+00 : f32
      %39 = vector.broadcast %cst_18 : f32 to vector<8x128xf32>
      %c0_19 = arith.constant 0 : index
      %c0_20 = arith.constant 0 : index
      %40 = vector.load %arg5[%c0_19, %c0_20] : memref<8x128xf32, #tpu.memory_space<vmem>>, vector<8x128xf32>
      tpu.vector_store %arg5[%c0_19, %c0_20], %39 {strides = array<i32>} : memref<8x128xf32, #tpu.memory_space<vmem>>, vector<8x128xf32>,
    } else {
    }
    %c1_i32 = arith.constant 1 : i32
    %3 = arith.muli %arg0, %c1_i32 : i32
    %4 = arith.addi %3, %arg1 : i32
    %c16_i32 = arith.constant 16 : i32
    %5 = arith.muli %4, %c16_i32 : i32
    %6 = tpu.iota {dimensions = array<i32: 0>} : vector<16x128xi32>
    %cst = arith.constant 0.000000e+00 : f32
    %7 = vector.broadcast %cst : f32 to vector<8x128xf32>
    %c0_i32_1 = arith.constant 0 : i32
    %c16_i32_2 = arith.constant 16 : i32
    %8 = arith.muli %c0_i32_1, %c16_i32_2 : i32
    %9 = tpu.assume_multiple %8, 16 : i32
    %10 = arith.index_cast %9 : i32 to index
    %c0 = arith.constant 0 : index
    %11 = vector.load %arg2[%10, %c0] : memref<16x128xf32, #tpu.memory_space<vmem>>, vector<16x128xf32>
    %12 = arith.index_cast %9 : i32 to index
    %c0_3 = arith.constant 0 : index
    %13 = vector.load %arg3[%12, %c0_3] : memref<16x128xf32, #tpu.memory_space<vmem>>, vector<16x128xf32>
    %14 = arith.subf %11, %13 : vector<16x128xf32>
    %cst_4 = arith.constant 1.000000e+00 : f32
    %15 = vector.broadcast %cst_4 : f32 to vector<16x128xf32>
    %16 = arith.cmpf olt, %13, %15 : vector<16x128xf32>
    %cst_5 = arith.constant 2.000000e+00 : f32
    %cst_6 = arith.constant 1.000000e+00 : f32
    %17 = vector.broadcast %cst_5 : f32 to vector<16x128xf32>
    %18 = vector.broadcast %cst_6 : f32 to vector<16x128xf32>
    %19 = arith.select %16, %17, %18 : vector<16x128xi1>, vector<16x128xf32>
    %20 = arith.mulf %14, %14 : vector<16x128xf32>
    %21 = arith.mulf %19, %20 : vector<16x128xf32>
    %c16_i32_7 = arith.constant 16 : i32
    %22 = arith.muli %c0_i32_1, %c16_i32_7 : i32
    %23 = arith.addi %5, %22 : i32
    %24 = vector.broadcast %23 : i32 to vector<16x128xi32>
    %25 = arith.addi %24, %6 : vector<16x128xi32>
    %c16_i32_8 = arith.constant 16 : i32
    %26 = vector.broadcast %c16_i32_8 : i32 to vector<16x128xi32>
    %27 = arith.cmpi slt, %25, %26 : vector<16x128xi32>
    %cst_9 = arith.constant 0.000000e+00 : f32
    %28 = vector.broadcast %cst_9 : f32 to vector<16x128xf32>
    %29 = arith.select %27, %21, %28 : vector<16x128xi1>, vector<16x128xf32>
    %30 = vector.shape_cast %29 : vector<16x128xf32> to vector<2x8x128xf32>
    %cst_10 = arith.constant dense<0.000000e+00> : vector<8x128xf32>
    %31 = vector.multi_reduction <add>, %30, %cst_10 [0] : vector<2x8x128xf32> to vector<8x128xf32>
    %32 = arith.addf %7, %31 : vector<8x128xf32>
    %c1_i32_11 = arith.constant 1 : i32
    %c0_12 = arith.constant 0 : index
    %c0_13 = arith.constant 0 : index
    %33 = vector.load %arg5[%c0_12, %c0_13] : memref<8x128xf32, #tpu.memory_space<vmem>>, vector<8x128xf32>
    %34 = arith.addf %33, %32 : vector<8x128xf32>
    %c0_14 = arith.constant 0 : index
    %c0_15 = arith.constant 0 : index
    %35 = vector.load %arg5[%c0_14, %c0_15] : memref<8x128xf32, #tpu.memory_space<vmem>>, vector<8x128xf32>
    tpu.vector_store %arg5[%c0_14, %c0_15], %34 {strides = array<i32>} : memref<8x128xf32, #tpu.memory_space<vmem>>, vector<8x128xf32>,
    %c0_i32_16 = arith.constant 0 : i32
    %36 = arith.cmpi eq, %arg1, %c0_i32_16 : i32
    %37 = arith.extui %36 : i1 to i32
    %c0_i32_17 = arith.constant 0 : i32
    %38 = arith.cmpi ne, %37, %c0_i32_17 : i32
    scf.if %38 {
      %c0_18 = arith.constant 0 : index
      %c0_19 = arith.constant 0 : index
      %39 = vector.load %arg5[%c0_18, %c0_19] : memref<8x128xf32, #tpu.memory_space<vmem>>, vector<8x128xf32>
      %cst_20 = arith.constant dense<0.000000e+00> : vector<128xf32>
      %40 = vector.multi_reduction <add>, %39, %cst_20 [0] : vector<8x128xf32> to vector<128xf32>
      %41 = vector.shape_cast %40 : vector<128xf32> to vector<1x128xf32>
      %c0_21 = arith.constant 0 : index
      %c0_22 = arith.constant 0 : index
      %42 = vector.load %arg4[%c0_21, %c0_22] : memref<1x128xf32, #tpu.memory_space<vmem>>, vector<1x128xf32>
      tpu.vector_store %arg4[%c0_21, %c0_22], %41 {strides = array<i32>} : memref<1x128xf32, #tpu.memory_space<vmem>>, vector<1x128xf32>,
    } else {
    }
    return
  }
  func.func @transform_0(%arg0: i32, %arg1: i32) -> (i32, i32) {
    %c1_i32 = arith.constant 1 : i32
    %0 = arith.muli %arg0, %c1_i32 : i32
    %1 = arith.addi %0, %arg1 : i32
    %c0_i32 = arith.constant 0 : i32
    %2 = arith.minsi %1, %c0_i32 : i32
    %c0_i32_0 = arith.constant 0 : i32
    %c0_i32_1 = arith.constant 0 : i32
    return %2, %c0_i32_0 : i32, i32
  }
  func.func @transform_1(%arg0: i32, %arg1: i32) -> (i32, i32) {
    %c1_i32 = arith.constant 1 : i32
    %0 = arith.muli %arg0, %c1_i32 : i32
    %1 = arith.addi %0, %arg1 : i32
    %c0_i32 = arith.constant 0 : i32
    %2 = arith.minsi %1, %c0_i32 : i32
    %c0_i32_0 = arith.constant 0 : i32
    %c0_i32_1 = arith.constant 0 : i32
    return %2, %c0_i32_0 : i32, i32
  }
  func.func @transform_2(%arg0: i32, %arg1: i32) -> (i32, i32) {
    %c0_i32 = arith.constant 0 : i32
    %c0_i32_0 = arith.constant 0 : i32
    return %arg0, %c0_i32 : i32, i32
  }
}

</mosaic_0001>

<llo_original>
// kernel: tpu_custom_call.1
$region0: #{tpu_custom_call.1}
  #allocation0 [shape = 'u32[]', space=smem, size = 0x4, offset = 0x4, fixed_abs, tag = 'smem constant byte address 0x4 - core index']
  #allocation1 [shape = 'u32[144,128]{1,0:T(1,128)}', space=vmem, size = 0x12000, scoped, tag = 'internal scratch']
  #allocation2 [shape = 'f32[8,128]{1,0:T(8,128)}', space=vmem, size = 0x1000, scoped, tag = 'scratch operand']
  %s0 = inlined_call_operand.hbm [shape: f32[16,128], index: 0, kind: input, shape index: {}]
  %s1 = inlined_call_operand.hbm [shape: f32[16,128], index: 1, kind: input, shape index: {}]
  %s2 = inlined_call_operand.hbm [shape: f32[1,128], index: 2, kind: output, shape index: {}]
  %s3 = sld [smem:[#allocation0]]
  $region34: #{tpu_custom_call.1} parent=0
    _
  %s5 = ssub.s32 1, %s3
  %s6 = scalar_select 0, %s5, %s3
  $region1: #{tpu_custom_call.1} parent=0
    #allocation3 [shape = 'u8[8192]{0}', space=vmem, size = 0x2000, scoped, tag = 'input window, operand 0, single buffered']
    #allocation4 [shape = 's32[1]{0}', space=sflag, size = 0x4, scoped, tag = 'scoped memory for tpu_custom_call.1']
    #allocation5 [shape = 's32[1]{0}', space=sflag, size = 0x4, scoped, tag = 'scoped memory for tpu_custom_call.1']
    #allocation6 [shape = 'u8[8192]{0}', space=vmem, size = 0x2000, scoped, tag = 'input window, operand 1, single buffered']
    #allocation7 [shape = 's32[1]{0}', space=sflag, size = 0x4, scoped, tag = 'scoped memory for tpu_custom_call.1']
    #allocation8 [shape = 'u8[512]{0}', space=vmem, size = 0x400, scoped, tag = 'output window, operand 0, single buffered']
    %7 = vsyncpa [#allocation4], 0
    %8 = vsyncpa [#allocation7], 0
    %9 = vsyncpa [#allocation5], 0
    // Predicated region
    $region2: #{tpu_custom_call.1} parent=1 // pred_check
      _
    $region3: #{tpu_custom_call.1} parent=1 // pred_check_branch
      %11 = sbr.rel (0) target = $region5
    $region4: #{tpu_custom_call.1} parent=1 // pred_region
      %s12 = sadd.s32 0, 0
      %p13 = scmp.lt.s32.totalorder %s12, 0
      %s14 = scalar_select %p13, %s12, 0
      %s15 = smul.u32 2, %s14
      %s17 = ssub.s32 256, 256
      %18 = vsyncadd [#allocation4], %s17
      %s19 = smul.addr %s15, 128
      %s20 = scalar_lea.hbm %s0, %s19
      %s21 = sshll.u32 [#allocation3], 4
      %s22 = int_to_ptr.vmem [resolvable:$true] %s21
      %27 = dma.hbm_to_vmem [thread:$0]  %s20, 256, %s22, [#allocation4], 128, 128, 8
    $region5: #{tpu_custom_call.1} parent=1 // pred_fallthru
      _
    // Predicated region
    $region6: #{tpu_custom_call.1} parent=1 // pred_check
      _
    $region7: #{tpu_custom_call.1} parent=1 // pred_check_branch
      %29 = sbr.rel (0) target = $region9
    $region8: #{tpu_custom_call.1} parent=1 // pred_region
      %s30 = sadd.s32 0, 0
      %p31 = scmp.lt.s32.totalorder %s30, 0
      %s32 = scalar_select %p31, %s30, 0
      %s33 = smul.u32 2, %s32
      %s35 = ssub.s32 256, 256
      %36 = vsyncadd [#allocation7], %s35
      %s37 = smul.addr %s33, 128
      %s38 = scalar_lea.hbm %s1, %s37
      %s39 = sshll.u32 [#allocation6], 4
      %s40 = int_to_ptr.vmem [resolvable:$true] %s39
      %45 = dma.hbm_to_vmem [thread:$0]  %s38, 256, %s40, [#allocation7], 128, 128, 8
    $region9: #{tpu_custom_call.1} parent=1 // pred_fallthru
      _
    // Predicated region
    $region10: #{tpu_custom_call.1} parent=1 // pred_check
      _
    $region11: #{tpu_custom_call.1} parent=1 // pred_check_branch
      %47 = sbr.rel (0) target = $region13
    $region12: #{tpu_custom_call.1} parent=1 // pred_region
      %48 = dma.done [#allocation4], 256
    $region13: #{tpu_custom_call.1} parent=1 // pred_fallthru
      _
    // Predicated region
    $region14: #{tpu_custom_call.1} parent=1 // pred_check
      _
    $region15: #{tpu_custom_call.1} parent=1 // pred_check_branch
      %50 = sbr.rel (0) target = $region17
    $region16: #{tpu_custom_call.1} parent=1 // pred_region
      %51 = dma.done [#allocation7], 256
    $region17: #{tpu_custom_call.1} parent=1 // pred_fallthru
      _
    %s52 = sadd.s32 0, 0
    %p53 = scmp.lt.s32.totalorder %s52, 0
    %s54 = scalar_select %p53, %s52, 0
    %s55 = smul.u32 2, %s54
    %s56 = sadd.s32 0, 0
    %p57 = scmp.lt.s32.totalorder %s56, 0
    %s58 = scalar_select %p57, %s56, 0
    %s59 = smul.u32 2, %s58
    %p60 = scmp.eq.s32.totalorder 0, 0
    // Predicated region
    $region18: #{tpu_custom_call.1} parent=1 // pred_check
      %p61 = pneg %p60
    $region19: #{tpu_custom_call.1} parent=1 // pred_check_branch
      %63 = sbr.rel (%p61) target = $region21
    $region20: #{tpu_custom_call.1} parent=1 // pred_region
      %64 = vst [vmem:[#allocation2] sm:$0xff] 0.0
    $region21: #{tpu_custom_call.1} parent=1 // pred_fallthru
      _
    %s65 = sadd.s32 0, 0
    %s66 = smul.u32 %s65, 16
    %v67 = vlaneseq
    %v68 = vshrl.u32 %v67, 7
    %v69 = vadd.s32 %v68, 8
    %v70 = vld [vmem:[#allocation3] sm:$0xff]
    %v71 = vld [vmem:[#allocation3 + $0x8] sm:$0xff]
    %v72 = vld [vmem:[#allocation6] sm:$0xff]
    %v73 = vld [vmem:[#allocation6 + $0x8] sm:$0xff]
    %v74 = vsub.f32 %v70, %v72
    %v75 = vsub.f32 %v71, %v73
    %vm76 = vcmp.lt.f32.partialorder %v72, 1.0
    %vm77 = vcmp.lt.f32.partialorder %v73, 1.0
    %v78 = vsel %vm76, 2.0, 1.0
    %v79 = vsel %vm77, 2.0, 1.0
    %v80 = vmul.f32 %v74, %v74
    %v81 = vmul.f32 %v75, %v75
    %v82 = vmul.f32 %v78, %v80
    %v83 = vmul.f32 %v79, %v81
    %v84 = vstv %s66
    %v85 = vadd.s32 %v84, %v68
    %v86 = vadd.s32 %v84, %v69
    %vm87 = vcmp.lt.s32.totalorder %v85, 16
    %vm88 = vcmp.lt.s32.totalorder %v86, 16
    %v89 = vsel %vm87, %v82, 0.0
    %v90 = vsel %vm88, %v83, 0.0
    %v91 = vadd.f32 %v89, %v90
    %v92 = vadd.f32 %v91, 0.0
    %v93 = vld [vmem:[#allocation2] sm:$0xff]
    %v94 = vadd.f32 %v93, %v92
    %95 = vst [vmem:[#allocation2] sm:$0xff] %v94
    // Predicated region
    $region22: #{tpu_custom_call.1} parent=1 // pred_check
      %p96 = pneg %p60
    $region23: #{tpu_custom_call.1} parent=1 // pred_check_branch
      %98 = sbr.rel (%p96) target = $region25
    $region24: #{tpu_custom_call.1} parent=1 // pred_region
      %v99 = vld [vmem:[#allocation2] sm:$0xff]
      %v100 = vrot.slane %v99, 4
      %v101 = vadd.f32 %v99, %v100
      %v102 = vrot.slane %v101, 2
      %v103 = vadd.f32 %v101, %v102
      %v104 = vrot.slane %v103, 1
      %v105 = vadd.f32 %v103, %v104
      %106 = vst [vmem:[#allocation8] sm:$0x1] %v105
    $region25: #{tpu_custom_call.1} parent=1 // pred_fallthru
      _
    // Predicated region
    $region26: #{tpu_custom_call.1} parent=1 // pred_check
      _
    $region27: #{tpu_custom_call.1} parent=1 // pred_check_branch
      %108 = sbr.rel (0) target = $region29
    $region28: #{tpu_custom_call.1} parent=1 // pred_region
      %s110 = ssub.s32 16, 16
      %111 = vsyncadd [#allocation5], %s110
      %s113 = sshll.u32 [#allocation8], 4
      %s114 = int_to_ptr.vmem [resolvable:$true] %s113
      %116 = dma.vmem_to_hbm [thread:$0]  %s114, 16, %s2, [#allocation5]
    $region29: #{tpu_custom_call.1} parent=1 // pred_fallthru
      _
    // Predicated region
    $region30: #{tpu_custom_call.1} parent=1 // pred_check
      _
    $region31: #{tpu_custom_call.1} parent=1 // pred_check_branch
      %118 = sbr.rel (0) target = $region33
    $region32: #{tpu_custom_call.1} parent=1 // pred_region
      %119 = dma.done [#allocation5], 16
    $region33: #{tpu_custom_call.1} parent=1 // pred_fallthru
      _
    %120 = vsyncpa [#allocation4], 1
    %121 = vsyncpa [#allocation7], 1
    %122 = vsyncpa [#allocation5], 1

</llo_original>
